<compile_context>
chip_gen: v5e
topology: v5e:2x2
jax: 0.10.0
libtpu: 0.0.40
codegen_flags: <defaults>
</compile_context>

<pallas_src>
import functools
import math

import jax
import jax.numpy as jnp
from jax.experimental import pallas as pl
from jax.experimental.pallas import tpu as pltpu

HIDDEN = 128  # fixed by the PyTorch module: Linear(n_modes,128) -> 128 -> n_modes


def clean_kernel(nt, x_ref, w1_ref, b1_ref, w2_ref, b2_ref, w3_ref, b3_ref, o_ref):
    rows, nm = x_ref.shape            # rows = TB * nt  (TB whole batches per tile)
    tb = rows // nt

    # 3-layer MLP on the whole row slab: bf16 operands on the MXU, f32 accum,
    # f32 bias/relu epilogue.
    h = jnp.dot(x_ref[...], w1_ref[...],
                preferred_element_type=jnp.float32) + b1_ref[...]
    h = jnp.maximum(h, 0.0)
    h = jnp.dot(h.astype(jnp.bfloat16), w2_ref[...],
                preferred_element_type=jnp.float32) + b2_ref[...]
    h = jnp.maximum(h, 0.0)
    out = jnp.dot(h.astype(jnp.bfloat16), w3_ref[...],
                  preferred_element_type=jnp.float32) + b3_ref[...]   # (rows, nm) f32

    # Epilogue per batch item: subtract the time-mean of the first two mode
    # columns (zero for the rest), then 5*tanh(0.1*x). Static unroll over the
    # few whole batches in this tile; slices are sublane-aligned (nt % 8 == 0
    # whenever tb > 1).
    col = jax.lax.broadcasted_iota(jnp.int32, (1, nm), 1)
    inv_nt = 1.0 / nt
    for b in range(tb):
        ob = out[b * nt:(b + 1) * nt, :]                       # (nt, nm) f32
        mean2 = jnp.where(col < 2,
                          jnp.sum(ob, axis=0, keepdims=True) * inv_nt,
                          0.0)                                 # (1, nm), zero past col 1
        o_ref[b * nt:(b + 1) * nt, :] = 5.0 * jnp.tanh(0.1 * (ob - mean2))


def _pick_batch_tile(nb, nt, target_rows=512):
    """Whole batches per row tile: aim at ~256-512 (multiple-of-8) rows per tile
    while keeping >= 2 grid steps when possible so both v7x TensorCores get work."""
    if nt % 8 != 0:
        return nb   # single full-array block: every BlockSpec dim == full dim
    divisors = [d for d in range(1, nb + 1) if nb % d == 0]
    fits = [d for d in divisors if d * nt <= target_rows]
    if not fits:
        return 1
    multi = [d for d in fits if nb // d >= 2]
    return max(multi) if multi else max(fits)


def clean_network_forward(x, params, index):
    """x: (nb, nt, nm) float32; params: list of per-step param dicts; index: python int."""
    nb, nt, nm = x.shape
    p = params[index]
    w1, b1, w2, b2, w3, b3 = p["w1"], p["b1"], p["w2"], p["b2"], p["w3"], p["b3"]

    # Flatten batch x time into one row axis (free, XLA-side) and cast matmul
    # operands to bf16 (halves activation/weight DMA). Biases stay f32.
    xf = x.reshape(nb * nt, nm).astype(jnp.bfloat16)
    w1b, w2b, w3b = (w1.astype(jnp.bfloat16), w2.astype(jnp.bfloat16),
                     w3.astype(jnp.bfloat16))

    tb = _pick_batch_tile(nb, nt)
    tile_rows = tb * nt
    grid = (nb // tb,)
    rows = nb * nt

    full = lambda shape: pl.BlockSpec(shape, lambda i: (0,) * len(shape))
    grid_spec = pltpu.PrefetchScalarGridSpec(
        num_scalar_prefetch=0,
        grid=grid,
        in_specs=[
            pl.BlockSpec((tile_rows, nm), lambda i: (i, 0)),
            # Weights/biases: constant index maps -> fetched once, VMEM-resident
            # across the whole grid (tiny, so default buffering is harmless).
            full((nm, HIDDEN)), full((1, HIDDEN)),
            full((HIDDEN, HIDDEN)), full((1, HIDDEN)),
            full((HIDDEN, nm)), full((1, nm)),
        ],
        out_specs=pl.BlockSpec((tile_rows, nm), lambda i: (i, 0)),
    )

    cost = pl.CostEstimate(
        flops=2 * rows * (nm * HIDDEN + HIDDEN * HIDDEN + HIDDEN * nm),
        transcendentals=rows * nm,  # tanh
        bytes_accessed=(rows * nm * 2 + rows * nm * 4
                        + (w1.size + w2.size + w3.size) * 2
                        + (b1.size + b2.size + b3.size) * 4),
    )

    out_flat = pl.pallas_call(
        functools.partial(clean_kernel, nt),
        out_shape=jax.ShapeDtypeStruct((rows, nm), jnp.float32),
        grid_spec=grid_spec,
        compiler_params=pltpu.CompilerParams(
            dimension_semantics=("parallel",),   # row tiles are independent
        ),
        cost_estimate=cost,
    )(xf, w1b, b1, w2b, b2, w3b, b3)
    # TODO(synk): with nm=16 the store path fills 16/128 lanes (masked vst); a
    # lane-dense (rows*nm/128, 128) output view could help if the in-kernel
    # relayout proves cheaper than the masked stores (needs measurement).
    return out_flat.reshape(nb, nt, nm)


def init_params(key, n_modes, gradient_steps):
    """Deterministic weight_init: kaiming_normal (relu, fan_in) weights, bias = 0.1."""
    params = []
    for _ in range(gradient_steps):
        keys = jax.random.split(key, 4)
        key = keys[0]

        def kaiming(k, fan_in, fan_out):
            std = math.sqrt(2.0 / fan_in)
            return std * jax.random.normal(k, (fan_in, fan_out), dtype=jnp.float32)

        params.append({
            "w1": kaiming(keys[1], n_modes, HIDDEN),
            "b1": jnp.full((1, HIDDEN), 0.1, jnp.float32),
            "w2": kaiming(keys[2], HIDDEN, HIDDEN),
            "b2": jnp.full((1, HIDDEN), 0.1, jnp.float32),
            "w3": kaiming(keys[3], HIDDEN, n_modes),
            "b3": jnp.full((1, n_modes), 0.1, jnp.float32),
        })
    return params


def _epilogue(out, nb, nt, nm):
    mean_tt = jnp.mean(out[:, :, 0:2], axis=1, keepdims=True)         # (nb,1,2)
    mean_tt = jnp.broadcast_to(mean_tt, (nb, nt, 2))
    mean_tt = jnp.pad(mean_tt, ((0, 0), (0, 0), (0, nm - 2)))
    return 5.0 * jnp.tanh(0.1 * (out - mean_tt))


def reference_forward_f32(x, params, index):
    """Pure-f32 reference matching the PyTorch module."""
    nb, nt, nm = x.shape
    p = params[index]
    h = jnp.maximum(x @ p["w1"] + p["b1"], 0.0)
    h = jnp.maximum(h @ p["w2"] + p["b2"], 0.0)
    out = h @ p["w3"] + p["b3"]
    return _epilogue(out, nb, nt, nm)


def reference_forward_bf16(x, params, index):
    """Reference with the kernel's numerics: bf16 matmul operands, f32 accumulation."""
    nb, nt, nm = x.shape
    p = params[index]
    bf = jnp.bfloat16
    w1, w2, w3 = p["w1"].astype(bf), p["w2"].astype(bf), p["w3"].astype(bf)
    h = jnp.dot(x.astype(bf), w1, preferred_element_type=jnp.float32) + p["b1"]
    h = jnp.maximum(h, 0.0)
    h = jnp.dot(h.astype(bf), w2, preferred_element_type=jnp.float32) + p["b2"]
    h = jnp.maximum(h, 0.0)
    out = jnp.dot(h.astype(bf), w3, preferred_element_type=jnp.float32) + p["b3"]
    return _epilogue(out, nb, nt, nm)


if __name__ == "__main__":
    # config = {'n_modes': 16, 'gradient_steps': 2, 'type_cleaning': 'fc'}
    # TODO(synk): 'conv1d' type_cleaning branch (Conv1d stack) not implemented; 'fc' only.
    n_modes, gradient_steps = 16, 2
    nb, nt = 8, 64          # 512 rows total -> two 256-row tiles (grid=(2,), parallel)
    index = 1

    key = jax.random.PRNGKey(0)
    kx, kp = jax.random.split(key)
    x = jax.random.normal(kx, (nb, nt, n_modes), dtype=jnp.float32)
    params = init_params(kp, n_modes, gradient_steps)

    out = clean_network_forward(x, params, index)
    out = jax.block_until_ready(out)

    # Tight check vs a reference with identical bf16-operand numerics ...
    ref_bf16 = reference_forward_bf16(x, params, index)
    assert jnp.allclose(out, ref_bf16, atol=2e-2, rtol=0.0), \
        "mismatch vs bf16-matched reference"
    # ... and a loose check vs the pure-f32 module semantics (bf16 MXU operands
    # lose mantissa bits; outputs live in [-5, 5]).
    ref_f32 = reference_forward_f32(x, params, index)
    assert jnp.allclose(out, ref_f32, atol=1.5e-1, rtol=0.0), \
        "mismatch vs f32 reference"
    print("KERNEL_OK")
</pallas_src>

<mosaic_0001>
module attributes {stable_mosaic.version = 11 : i64} {
  func.func @clean_kernel(%arg0: i32, %arg1: memref<256x16xbf16, #tpu.memory_space<vmem>>, %arg2: memref<16x128xbf16, #tpu.memory_space<vmem>>, %arg3: memref<1x128xf32, #tpu.memory_space<vmem>>, %arg4: memref<128x128xbf16, #tpu.memory_space<vmem>>, %arg5: memref<1x128xf32, #tpu.memory_space<vmem>>, %arg6: memref<128x16xbf16, #tpu.memory_space<vmem>>, %arg7: memref<1x16xf32, #tpu.memory_space<vmem>>, %arg8: memref<256x16xf32, #tpu.memory_space<vmem>>) attributes {dimension_semantics = [#tpu.dimension_semantics<parallel>], iteration_bounds = array<i64: 2>, scalar_prefetch = 0 : i64, scratch_operands = 0 : i64, tpu.core_type = #tpu.core_type<tc>, window_params = [{transform_indices = @transform_0, window_bounds = array<i64: 256, 16>}, {pipeline_mode = #tpu.pipeline_mode<synchronous>, transform_indices = @transform_1, window_bounds = array<i64: 16, 128>}, {pipeline_mode = #tpu.pipeline_mode<synchronous>, transform_indices = @transform_2, window_bounds = array<i64: 1, 128>}, {pipeline_mode = #tpu.pipeline_mode<synchronous>, transform_indices = @transform_3, window_bounds = array<i64: 128, 128>}, {pipeline_mode = #tpu.pipeline_mode<synchronous>, transform_indices = @transform_4, window_bounds = array<i64: 1, 128>}, {pipeline_mode = #tpu.pipeline_mode<synchronous>, transform_indices = @transform_5, window_bounds = array<i64: 128, 16>}, {pipeline_mode = #tpu.pipeline_mode<synchronous>, transform_indices = @transform_6, window_bounds = array<i64: 1, 16>}, {transform_indices = @transform_7, window_bounds = array<i64: 256, 16>}]} {
    %c0 = arith.constant 0 : index
    %c0_0 = arith.constant 0 : index
    %0 = vector.load %arg1[%c0, %c0_0] : memref<256x16xbf16, #tpu.memory_space<vmem>>, vector<256x16xbf16>
    %c0_1 = arith.constant 0 : index
    %c0_2 = arith.constant 0 : index
    %1 = vector.load %arg2[%c0_1, %c0_2] : memref<16x128xbf16, #tpu.memory_space<vmem>>, vector<16x128xbf16>
    %cst = arith.constant dense<0.000000e+00> : vector<256x128xf32>
    %2 = tpu.matmul %0, %1, %cst {dimension_numbers = #tpu.dot_dimension_numbers<[1], [0], [0], [1], [0, 0, 1, 1], [], []>} : vector<256x16xbf16>, vector<16x128xbf16>, vector<256x128xf32> -> vector<256x128xf32>
    %c0_3 = arith.constant 0 : index
    %c0_4 = arith.constant 0 : index
    %3 = vector.load %arg3[%c0_3, %c0_4] : memref<1x128xf32, #tpu.memory_space<vmem>>, vector<1x128xf32>
    %4 = vector.broadcast %3 : vector<1x128xf32> to vector<256x128xf32>
    %5 = arith.addf %2, %4 : vector<256x128xf32>
    %cst_5 = arith.constant 0.000000e+00 : f32
    %6 = vector.broadcast %cst_5 : f32 to vector<256x128xf32>
    %7 = arith.maximumf %5, %6 : vector<256x128xf32>
    %8 = arith.truncf %7 : vector<256x128xf32> to vector<256x128xbf16>
    %c0_6 = arith.constant 0 : index
    %c0_7 = arith.constant 0 : index
    %9 = vector.load %arg4[%c0_6, %c0_7] : memref<128x128xbf16, #tpu.memory_space<vmem>>, vector<128x128xbf16>
    %cst_8 = arith.constant dense<0.000000e+00> : vector<256x128xf32>
    %10 = tpu.matmul %8, %9, %cst_8 {dimension_numbers = #tpu.dot_dimension_numbers<[1], [0], [0], [1], [0, 0, 1, 1], [], []>} : vector<256x128xbf16>, vector<128x128xbf16>, vector<256x128xf32> -> vector<256x128xf32>
    %c0_9 = arith.constant 0 : index
    %c0_10 = arith.constant 0 : index
    %11 = vector.load %arg5[%c0_9, %c0_10] : memref<1x128xf32, #tpu.memory_space<vmem>>, vector<1x128xf32>
    %12 = vector.broadcast %11 : vector<1x128xf32> to vector<256x128xf32>
    %13 = arith.addf %10, %12 : vector<256x128xf32>
    %cst_11 = arith.constant 0.000000e+00 : f32
    %14 = vector.broadcast %cst_11 : f32 to vector<256x128xf32>
    %15 = arith.maximumf %13, %14 : vector<256x128xf32>
    %16 = arith.truncf %15 : vector<256x128xf32> to vector<256x128xbf16>
    %c0_12 = arith.constant 0 : index
    %c0_13 = arith.constant 0 : index
    %17 = vector.load %arg6[%c0_12, %c0_13] : memref<128x16xbf16, #tpu.memory_space<vmem>>, vector<128x16xbf16>
    %cst_14 = arith.constant dense<0.000000e+00> : vector<256x16xf32>
    %18 = tpu.matmul %16, %17, %cst_14 {dimension_numbers = #tpu.dot_dimension_numbers<[1], [0], [0], [1], [0, 0, 1, 1], [], []>} : vector<256x128xbf16>, vector<128x16xbf16>, vector<256x16xf32> -> vector<256x16xf32>
    %c0_15 = arith.constant 0 : index
    %c0_16 = arith.constant 0 : index
    %19 = vector.load %arg7[%c0_15, %c0_16] : memref<1x16xf32, #tpu.memory_space<vmem>>, vector<1x16xf32>
    %20 = vector.broadcast %19 : vector<1x16xf32> to vector<256x16xf32>
    %21 = arith.addf %18, %20 : vector<256x16xf32>
    %22 = tpu.iota {dimensions = array<i32: 1>} : vector<1x16xi32>
    %23 = vector.extract_strided_slice %21 {offsets = [0, 0], sizes = [64, 16], strides = [1, 1]} : vector<256x16xf32> to vector<64x16xf32>
    %c2_i32 = arith.constant 2 : i32
    %24 = vector.broadcast %c2_i32 : i32 to vector<1x16xi32>
    %25 = arith.cmpi slt, %22, %24 : vector<1x16xi32>
    %cst_17 = arith.constant dense<0.000000e+00> : vector<16xf32>
    %26 = vector.multi_reduction <add>, %23, %cst_17 [0] : vector<64x16xf32> to vector<16xf32>
    %27 = vector.shape_cast %26 : vector<16xf32> to vector<1x16xf32>
    %cst_18 = arith.constant 1.562500e-02 : f32
    %28 = vector.broadcast %cst_18 : f32 to vector<1x16xf32>
    %29 = arith.mulf %27, %28 : vector<1x16xf32>
    %cst_19 = arith.constant 0.000000e+00 : f32
    %30 = vector.broadcast %cst_19 : f32 to vector<1x16xf32>
    %31 = arith.select %25, %29, %30 : vector<1x16xi1>, vector<1x16xf32>
    %32 = vector.broadcast %31 : vector<1x16xf32> to vector<64x16xf32>
    %33 = arith.subf %23, %32 : vector<64x16xf32>
    %cst_20 = arith.constant 1.000000e-01 : f32
    %34 = vector.broadcast %cst_20 : f32 to vector<64x16xf32>
    %35 = arith.mulf %34, %33 : vector<64x16xf32>
    %36 = math.tanh %35 : vector<64x16xf32>
    %cst_21 = arith.constant 5.000000e+00 : f32
    %37 = vector.broadcast %cst_21 : f32 to vector<64x16xf32>
    %38 = arith.mulf %37, %36 : vector<64x16xf32>
    %c0_22 = arith.constant 0 : index
    %c0_23 = arith.constant 0 : index
    %39 = vector.load %arg8[%c0_22, %c0_23] : memref<256x16xf32, #tpu.memory_space<vmem>>, vector<64x16xf32>
    tpu.vector_store %arg8[%c0_22, %c0_23], %38 {strides = array<i32>} : memref<256x16xf32, #tpu.memory_space<vmem>>, vector<64x16xf32>,
    %40 = vector.extract_strided_slice %21 {offsets = [64, 0], sizes = [64, 16], strides = [1, 1]} : vector<256x16xf32> to vector<64x16xf32>
    %c2_i32_24 = arith.constant 2 : i32
    %41 = vector.broadcast %c2_i32_24 : i32 to vector<1x16xi32>
    %42 = arith.cmpi slt, %22, %41 : vector<1x16xi32>
    %cst_25 = arith.constant dense<0.000000e+00> : vector<16xf32>
    %43 = vector.multi_reduction <add>, %40, %cst_25 [0] : vector<64x16xf32> to vector<16xf32>
    %44 = vector.shape_cast %43 : vector<16xf32> to vector<1x16xf32>
    %cst_26 = arith.constant 1.562500e-02 : f32
    %45 = vector.broadcast %cst_26 : f32 to vector<1x16xf32>
    %46 = arith.mulf %44, %45 : vector<1x16xf32>
    %cst_27 = arith.constant 0.000000e+00 : f32
    %47 = vector.broadcast %cst_27 : f32 to vector<1x16xf32>
    %48 = arith.select %42, %46, %47 : vector<1x16xi1>, vector<1x16xf32>
    %49 = vector.broadcast %48 : vector<1x16xf32> to vector<64x16xf32>
    %50 = arith.subf %40, %49 : vector<64x16xf32>
    %cst_28 = arith.constant 1.000000e-01 : f32
    %51 = vector.broadcast %cst_28 : f32 to vector<64x16xf32>
    %52 = arith.mulf %51, %50 : vector<64x16xf32>
    %53 = math.tanh %52 : vector<64x16xf32>
    %cst_29 = arith.constant 5.000000e+00 : f32
    %54 = vector.broadcast %cst_29 : f32 to vector<64x16xf32>
    %55 = arith.mulf %54, %53 : vector<64x16xf32>
    %c64 = arith.constant 64 : index
    %c0_30 = arith.constant 0 : index
    %56 = vector.load %arg8[%c64, %c0_30] : memref<256x16xf32, #tpu.memory_space<vmem>>, vector<64x16xf32>
    tpu.vector_store %arg8[%c64, %c0_30], %55 {strides = array<i32>} : memref<256x16xf32, #tpu.memory_space<vmem>>, vector<64x16xf32>,
    %57 = vector.extract_strided_slice %21 {offsets = [128, 0], sizes = [64, 16], strides = [1, 1]} : vector<256x16xf32> to vector<64x16xf32>
    %c2_i32_31 = arith.constant 2 : i32
    %58 = vector.broadcast %c2_i32_31 : i32 to vector<1x16xi32>
    %59 = arith.cmpi slt, %22, %58 : vector<1x16xi32>
    %cst_32 = arith.constant dense<0.000000e+00> : vector<16xf32>
    %60 = vector.multi_reduction <add>, %57, %cst_32 [0] : vector<64x16xf32> to vector<16xf32>
    %61 = vector.shape_cast %60 : vector<16xf32> to vector<1x16xf32>
    %cst_33 = arith.constant 1.562500e-02 : f32
    %62 = vector.broadcast %cst_33 : f32 to vector<1x16xf32>
    %63 = arith.mulf %61, %62 : vector<1x16xf32>
    %cst_34 = arith.constant 0.000000e+00 : f32
    %64 = vector.broadcast %cst_34 : f32 to vector<1x16xf32>
    %65 = arith.select %59, %63, %64 : vector<1x16xi1>, vector<1x16xf32>
    %66 = vector.broadcast %65 : vector<1x16xf32> to vector<64x16xf32>
    %67 = arith.subf %57, %66 : vector<64x16xf32>
    %cst_35 = arith.constant 1.000000e-01 : f32
    %68 = vector.broadcast %cst_35 : f32 to vector<64x16xf32>
    %69 = arith.mulf %68, %67 : vector<64x16xf32>
    %70 = math.tanh %69 : vector<64x16xf32>
    %cst_36 = arith.constant 5.000000e+00 : f32
    %71 = vector.broadcast %cst_36 : f32 to vector<64x16xf32>
    %72 = arith.mulf %71, %70 : vector<64x16xf32>
    %c128 = arith.constant 128 : index
    %c0_37 = arith.constant 0 : index
    %73 = vector.load %arg8[%c128, %c0_37] : memref<256x16xf32, #tpu.memory_space<vmem>>, vector<64x16xf32>
    tpu.vector_store %arg8[%c128, %c0_37], %72 {strides = array<i32>} : memref<256x16xf32, #tpu.memory_space<vmem>>, vector<64x16xf32>,
    %74 = vector.extract_strided_slice %21 {offsets = [192, 0], sizes = [64, 16], strides = [1, 1]} : vector<256x16xf32> to vector<64x16xf32>
    %c2_i32_38 = arith.constant 2 : i32
    %75 = vector.broadcast %c2_i32_38 : i32 to vector<1x16xi32>
    %76 = arith.cmpi slt, %22, %75 : vector<1x16xi32>
    %cst_39 = arith.constant dense<0.000000e+00> : vector<16xf32>
    %77 = vector.multi_reduction <add>, %74, %cst_39 [0] : vector<64x16xf32> to vector<16xf32>
    %78 = vector.shape_cast %77 : vector<16xf32> to vector<1x16xf32>
    %cst_40 = arith.constant 1.562500e-02 : f32
    %79 = vector.broadcast %cst_40 : f32 to vector<1x16xf32>
    %80 = arith.mulf %78, %79 : vector<1x16xf32>
    %cst_41 = arith.constant 0.000000e+00 : f32
    %81 = vector.broadcast %cst_41 : f32 to vector<1x16xf32>
    %82 = arith.select %76, %80, %81 : vector<1x16xi1>, vector<1x16xf32>
    %83 = vector.broadcast %82 : vector<1x16xf32> to vector<64x16xf32>
    %84 = arith.subf %74, %83 : vector<64x16xf32>
    %cst_42 = arith.constant 1.000000e-01 : f32
    %85 = vector.broadcast %cst_42 : f32 to vector<64x16xf32>
    %86 = arith.mulf %85, %84 : vector<64x16xf32>
    %87 = math.tanh %86 : vector<64x16xf32>
    %cst_43 = arith.constant 5.000000e+00 : f32
    %88 = vector.broadcast %cst_43 : f32 to vector<64x16xf32>
    %89 = arith.mulf %88, %87 : vector<64x16xf32>
    %c192 = arith.constant 192 : index
    %c0_44 = arith.constant 0 : index
    %90 = vector.load %arg8[%c192, %c0_44] : memref<256x16xf32, #tpu.memory_space<vmem>>, vector<64x16xf32>
    tpu.vector_store %arg8[%c192, %c0_44], %89 {strides = array<i32>} : memref<256x16xf32, #tpu.memory_space<vmem>>, vector<64x16xf32>,
    return
  }
  func.func @transform_0(%arg0: i32) -> (i32, i32) {
    %c0_i32 = arith.constant 0 : i32
    %c0_i32_0 = arith.constant 0 : i32
    return %arg0, %c0_i32 : i32, i32
  }
  func.func @transform_1(%arg0: i32) -> (i32, i32) {
    %c0_i32 = arith.constant 0 : i32
    %c0_i32_0 = arith.constant 0 : i32
    %c0_i32_1 = arith.constant 0 : i32
    return %c0_i32, %c0_i32_0 : i32, i32
  }
  func.func @transform_2(%arg0: i32) -> (i32, i32) {
    %c0_i32 = arith.constant 0 : i32
    %c0_i32_0 = arith.constant 0 : i32
    %c0_i32_1 = arith.constant 0 : i32
    return %c0_i32, %c0_i32_0 : i32, i32
  }
  func.func @transform_3(%arg0: i32) -> (i32, i32) {
    %c0_i32 = arith.constant 0 : i32
    %c0_i32_0 = arith.constant 0 : i32
    %c0_i32_1 = arith.constant 0 : i32
    return %c0_i32, %c0_i32_0 : i32, i32
  }
  func.func @transform_4(%arg0: i32) -> (i32, i32) {
    %c0_i32 = arith.constant 0 : i32
    %c0_i32_0 = arith.constant 0 : i32
    %c0_i32_1 = arith.constant 0 : i32
    return %c0_i32, %c0_i32_0 : i32, i32
  }
  func.func @transform_5(%arg0: i32) -> (i32, i32) {
    %c0_i32 = arith.constant 0 : i32
    %c0_i32_0 = arith.constant 0 : i32
    %c0_i32_1 = arith.constant 0 : i32
    return %c0_i32, %c0_i32_0 : i32, i32
  }
  func.func @transform_6(%arg0: i32) -> (i32, i32) {
    %c0_i32 = arith.constant 0 : i32
    %c0_i32_0 = arith.constant 0 : i32
    %c0_i32_1 = arith.constant 0 : i32
    return %c0_i32, %c0_i32_0 : i32, i32
  }
  func.func @transform_7(%arg0: i32) -> (i32, i32) {
    %c0_i32 = arith.constant 0 : i32
    %c0_i32_0 = arith.constant 0 : i32
    return %arg0, %c0_i32 : i32, i32
  }
}

</mosaic_0001>

<llo_original>
// kernel: tpu_custom_call.1
$region0: #{tpu_custom_call.1}
  #allocation0 [shape = 'u32[]', space=smem, size = 0x4, offset = 0x4, fixed_abs, tag = 'smem constant byte address 0x4 - core index']
  #allocation1 [shape = 'u32[72,128]{1,0:T(1,128)}', space=vmem, size = 0x9000, scoped, tag = 'internal scratch']
  %s0 = inlined_call_operand.vmem [shape: bf16[512,16], index: 0, kind: input, shape index: {}]
  %s1 = inlined_call_operand.vmem [shape: bf16[16,128], index: 1, kind: input, shape index: {}]
  %s2 = inlined_call_operand.vmem [shape: f32[1,128], index: 2, kind: input, shape index: {}]
  %s3 = inlined_call_operand.vmem [shape: bf16[128,128], index: 3, kind: input, shape index: {}]
  %s4 = inlined_call_operand.vmem [shape: f32[1,128], index: 4, kind: input, shape index: {}]
  %s5 = inlined_call_operand.vmem [shape: bf16[128,16], index: 5, kind: input, shape index: {}]
  %s6 = inlined_call_operand.vmem [shape: f32[1,16], index: 6, kind: input, shape index: {}]
  %s7 = inlined_call_operand.vmem [shape: f32[512,16], index: 7, kind: output, shape index: {}]
  %s8 = sld [smem:[#allocation0]]
  $region61: #{tpu_custom_call.1} parent=0
    _
  %s10 = ssub.s32 1, %s8
  %s11 = scalar_select 0, %s10, %s8
  loop: start=0, step=1, limit=4
  $region2: #{tpu_custom_call.1} parent=0 // loop_pre_header
    _
  $region3: #{tpu_custom_call.1} parent=0 // loop_header
    %s13 = sphi 0, %s17
    %p14 = scmp.ge.s32.totalorder %s13, 4
    %s23 = sphi 0, %s25
    %s26 = sphi 0, %s23
    %s27 = sphi 0, %s26
    %s43 = sphi 0, %s27
    %s47 = sphi 0, %s47
    %s49 = sphi 0, %s47
    %s50 = sphi 0, %s49
    %s64 = sphi 0, %s50
    %s68 = sphi 0, %s68
    %s70 = sphi 0, %s68
    %s71 = sphi 0, %s70
    %s85 = sphi 0, %s71
    %s89 = sphi 0, %s89
    %s91 = sphi 0, %s89
    %s92 = sphi 0, %s91
    %s106 = sphi 0, %s92
    %s110 = sphi 0, %s110
    %s112 = sphi 0, %s110
    %s113 = sphi 0, %s112
    %s127 = sphi 0, %s113
    %s131 = sphi 0, %s131
    %s133 = sphi 0, %s131
    %s134 = sphi 0, %s133
    %s148 = sphi 0, %s134
    %s152 = sphi 0, %s152
    %s154 = sphi 0, %s152
    %s155 = sphi 0, %s154
    %s169 = sphi 0, %s155
    %s175 = sphi 0, %s177
    %s178 = sphi 0, %s175
    %s179 = sphi 0, %s178
    %s195 = sphi 0, %s179
  $region4: #{tpu_custom_call.1} parent=0 // loop_header_branch
    %16 = sbr.rel (%p14) target = $region8
  $region5: #{tpu_custom_call.1} parent=0 // loop_body
    %s18 = ssub.s32 %s13, 1
    %s19 = ssub.s32 %s13, 2
    %s20 = sadd.s32 %s13, 1
    %s21 = ssub.s32 %s13, %s20
    %p22 = scmp.eq.s32.totalorder %s21, 0
    %s24 = sadd.s32 %s23, 1
    %s25 = scalar_select %p22, %s23, %s24
    %p28 = pneg %p22
    %p29 = scmp.eq.s32.totalorder %s13, 1
    %p30 = por %p28, %p29
    %p31 = scmp.ne.s32.totalorder %s23, %s26
    %p32 = scmp.eq.s32.totalorder %s13, 0
    %p33 = por %p31, %p32
    %p34 = scmp.ne.s32.totalorder %s23, %s26
    %p35 = scmp.eq.s32.totalorder %s18, 1
    %p36 = por %p34, %p35
    %p37 = scmp.ne.s32.totalorder %s26, %s27
    %p38 = scmp.eq.s32.totalorder %s18, 0
    %p39 = por %p37, %p38
    %p40 = scmp.ne.s32.totalorder %s26, %s27
    %p41 = scmp.eq.s32.totalorder %s19, 1
    %p42 = por %p40, %p41
    %p44 = scmp.ne.s32.totalorder %s27, %s43
    %p45 = scmp.eq.s32.totalorder %s19, 0
    %p46 = por %p44, %p45
    %s48 = sadd.s32 %s47, 1
    %p51 = scmp.eq.s32.totalorder %s13, 1
    %p52 = scmp.ne.s32.totalorder %s47, %s49
    %p53 = scmp.eq.s32.totalorder %s13, 0
    %p54 = por %p52, %p53
    %p55 = scmp.ne.s32.totalorder %s47, %s49
    %p56 = scmp.eq.s32.totalorder %s18, 1
    %p57 = por %p55, %p56
    %p58 = scmp.ne.s32.totalorder %s49, %s50
    %p59 = scmp.eq.s32.totalorder %s18, 0
    %p60 = por %p58, %p59
    %p61 = scmp.ne.s32.totalorder %s49, %s50
    %p62 = scmp.eq.s32.totalorder %s19, 1
    %p63 = por %p61, %p62
    %p65 = scmp.ne.s32.totalorder %s50, %s64
    %p66 = scmp.eq.s32.totalorder %s19, 0
    %p67 = por %p65, %p66
    %s69 = sadd.s32 %s68, 1
    %p72 = scmp.eq.s32.totalorder %s13, 1
    %p73 = scmp.ne.s32.totalorder %s68, %s70
    %p74 = scmp.eq.s32.totalorder %s13, 0
    %p75 = por %p73, %p74
    %p76 = scmp.ne.s32.totalorder %s68, %s70
    %p77 = scmp.eq.s32.totalorder %s18, 1
    %p78 = por %p76, %p77
    %p79 = scmp.ne.s32.totalorder %s70, %s71
    %p80 = scmp.eq.s32.totalorder %s18, 0
    %p81 = por %p79, %p80
    %p82 = scmp.ne.s32.totalorder %s70, %s71
    %p83 = scmp.eq.s32.totalorder %s19, 1
    %p84 = por %p82, %p83
    %p86 = scmp.ne.s32.totalorder %s71, %s85
    %p87 = scmp.eq.s32.totalorder %s19, 0
    %p88 = por %p86, %p87
    %s90 = sadd.s32 %s89, 1
    %p93 = scmp.eq.s32.totalorder %s13, 1
    %p94 = scmp.ne.s32.totalorder %s89, %s91
    %p95 = scmp.eq.s32.totalorder %s13, 0
    %p96 = por %p94, %p95
    %p97 = scmp.ne.s32.totalorder %s89, %s91
    %p98 = scmp.eq.s32.totalorder %s18, 1
    %p99 = por %p97, %p98
    %p100 = scmp.ne.s32.totalorder %s91, %s92
    %p101 = scmp.eq.s32.totalorder %s18, 0
    %p102 = por %p100, %p101
    %p103 = scmp.ne.s32.totalorder %s91, %s92
    %p104 = scmp.eq.s32.totalorder %s19, 1
    %p105 = por %p103, %p104
    %p107 = scmp.ne.s32.totalorder %s92, %s106
    %p108 = scmp.eq.s32.totalorder %s19, 0
    %p109 = por %p107, %p108
    %s111 = sadd.s32 %s110, 1
    %p114 = scmp.eq.s32.totalorder %s13, 1
    %p115 = scmp.ne.s32.totalorder %s110, %s112
    %p116 = scmp.eq.s32.totalorder %s13, 0
    %p117 = por %p115, %p116
    %p118 = scmp.ne.s32.totalorder %s110, %s112
    %p119 = scmp.eq.s32.totalorder %s18, 1
    %p120 = por %p118, %p119
    %p121 = scmp.ne.s32.totalorder %s112, %s113
    %p122 = scmp.eq.s32.totalorder %s18, 0
    %p123 = por %p121, %p122
    %p124 = scmp.ne.s32.totalorder %s112, %s113
    %p125 = scmp.eq.s32.totalorder %s19, 1
    %p126 = por %p124, %p125
    %p128 = scmp.ne.s32.totalorder %s113, %s127
    %p129 = scmp.eq.s32.totalorder %s19, 0
    %p130 = por %p128, %p129
    %s132 = sadd.s32 %s131, 1
    %p135 = scmp.eq.s32.totalorder %s13, 1
    %p136 = scmp.ne.s32.totalorder %s131, %s133
    %p137 = scmp.eq.s32.totalorder %s13, 0
    %p138 = por %p136, %p137
    %p139 = scmp.ne.s32.totalorder %s131, %s133
    %p140 = scmp.eq.s32.totalorder %s18, 1
    %p141 = por %p139, %p140
    %p142 = scmp.ne.s32.totalorder %s133, %s134
    %p143 = scmp.eq.s32.totalorder %s18, 0
    %p144 = por %p142, %p143
    %p145 = scmp.ne.s32.totalorder %s133, %s134
    %p146 = scmp.eq.s32.totalorder %s19, 1
    %p147 = por %p145, %p146
    %p149 = scmp.ne.s32.totalorder %s134, %s148
    %p150 = scmp.eq.s32.totalorder %s19, 0
    %p151 = por %p149, %p150
    %s153 = sadd.s32 %s152, 1
    %p156 = scmp.eq.s32.totalorder %s13, 1
    %p157 = scmp.ne.s32.totalorder %s152, %s154
    %p158 = scmp.eq.s32.totalorder %s13, 0
    %p159 = por %p157, %p158
    %p160 = scmp.ne.s32.totalorder %s152, %s154
    %p161 = scmp.eq.s32.totalorder %s18, 1
    %p162 = por %p160, %p161
    %p163 = scmp.ne.s32.totalorder %s154, %s155
    %p164 = scmp.eq.s32.totalorder %s18, 0
    %p165 = por %p163, %p164
    %p166 = scmp.ne.s32.totalorder %s154, %s155
    %p167 = scmp.eq.s32.totalorder %s19, 1
    %p168 = por %p166, %p167
    %p170 = scmp.ne.s32.totalorder %s155, %s169
    %p171 = scmp.eq.s32.totalorder %s19, 0
    %p172 = por %p170, %p171
    %s173 = ssub.s32 %s13, %s20
    %p174 = scmp.eq.s32.totalorder %s173, 0
    %s176 = sadd.s32 %s175, 1
    %s177 = scalar_select %p174, %s175, %s176
    %p180 = pneg %p174
    %p181 = scmp.eq.s32.totalorder %s13, 1
    %p182 = por %p180, %p181
    %p183 = scmp.ne.s32.totalorder %s175, %s178
    %p184 = scmp.eq.s32.totalorder %s13, 0
    %p185 = por %p183, %p184
    %p186 = scmp.ne.s32.totalorder %s175, %s178
    %p187 = scmp.eq.s32.totalorder %s18, 1
    %p188 = por %p186, %p187
    %p189 = scmp.ne.s32.totalorder %s178, %s179
    %p190 = scmp.eq.s32.totalorder %s18, 0
    %p191 = por %p189, %p190
    %p192 = scmp.ne.s32.totalorder %s178, %s179
    %p193 = scmp.eq.s32.totalorder %s19, 1
    %p194 = por %p192, %p193
    %p196 = scmp.ne.s32.totalorder %s179, %s195
    %p197 = scmp.eq.s32.totalorder %s19, 0
    %p198 = por %p196, %p197
    %p199 = scmp.le.s32.totalorder 1, %s13
    %p200 = scmp.lt.s32.totalorder %s13, 3
    %p201 = pnand %p199, %p200
    %p202 = pneg %p201
    // Predicated region
    $region9: #{tpu_custom_call.1} parent=5 // pred_check
      _
    $region10: #{tpu_custom_call.1} parent=5 // pred_check_branch
      %204 = sbr.rel (%p201) target = $region12
    $region11: #{tpu_custom_call.1} parent=5 // pred_region
      %s205 = ssub.s32 %s13, 1
      // Predicated region
      $region13: #{tpu_custom_call.1} parent=11 // pred_check
        %p206 = pneg %p60
      $region14: #{tpu_custom_call.1} parent=11 // pred_check_branch
        %208 = sbr.rel (%p206) target = $region16
      $region15: #{tpu_custom_call.1} parent=11 // pred_region
        _
      $region16: #{tpu_custom_call.1} parent=11 // pred_fallthru
        _
      // Predicated region
      $region17: #{tpu_custom_call.1} parent=11 // pred_check
        %p209 = pneg %p81
      $region18: #{tpu_custom_call.1} parent=11 // pred_check_branch
        %211 = sbr.rel (%p209) target = $region20
      $region19: #{tpu_custom_call.1} parent=11 // pred_region
        _
      $region20: #{tpu_custom_call.1} parent=11 // pred_fallthru
        _
      // Predicated region
      $region21: #{tpu_custom_call.1} parent=11 // pred_check
        %p212 = pneg %p102
      $region22: #{tpu_custom_call.1} parent=11 // pred_check_branch
        %214 = sbr.rel (%p212) target = $region24
      $region23: #{tpu_custom_call.1} parent=11 // pred_region
        _
      $region24: #{tpu_custom_call.1} parent=11 // pred_fallthru
        _
      // Predicated region
      $region25: #{tpu_custom_call.1} parent=11 // pred_check
        %p215 = pneg %p123
      $region26: #{tpu_custom_call.1} parent=11 // pred_check_branch
        %217 = sbr.rel (%p215) target = $region28
      $region27: #{tpu_custom_call.1} parent=11 // pred_region
        _
      $region28: #{tpu_custom_call.1} parent=11 // pred_fallthru
        _
      // Predicated region
      $region29: #{tpu_custom_call.1} parent=11 // pred_check
        %p218 = pneg %p144
      $region30: #{tpu_custom_call.1} parent=11 // pred_check_branch
        %220 = sbr.rel (%p218) target = $region32
      $region31: #{tpu_custom_call.1} parent=11 // pred_region
        _
      $region32: #{tpu_custom_call.1} parent=11 // pred_fallthru
        _
      // Predicated region
      $region33: #{tpu_custom_call.1} parent=11 // pred_check
        %p221 = pneg %p165
      $region34: #{tpu_custom_call.1} parent=11 // pred_check_branch
        %223 = sbr.rel (%p221) target = $region36
      $region35: #{tpu_custom_call.1} parent=11 // pred_region
        _
      $region36: #{tpu_custom_call.1} parent=11 // pred_fallthru
        _
    $region12: #{tpu_custom_call.1} parent=5 // pred_fallthru
      _
    %p224 = scmp.lt.s32.totalorder %s13, 2
    // Predicated region
    $region37: #{tpu_custom_call.1} parent=5 // pred_check
      %p225 = pneg %p224
    $region38: #{tpu_custom_call.1} parent=5 // pred_check_branch
      %227 = sbr.rel (%p225) target = $region40
    $region39: #{tpu_custom_call.1} parent=5 // pred_region
      // Predicated region
      $region41: #{tpu_custom_call.1} parent=39 // pred_check
        %p228 = pneg %p33
      $region42: #{tpu_custom_call.1} parent=39 // pred_check_branch
        %230 = sbr.rel (%p228) target = $region44
      $region43: #{tpu_custom_call.1} parent=39 // pred_region
        %s231 = smul.u32 32, %s13
        %p232 = scmp.lt.s32.totalorder %s231, 63
        %s233 = scalar_select %p232, %s231, 63
        %s234 = smul.addr %s233, 4
        %s235 = scalar_lea.vmem %s0, %s234
        %s236 = smul.u32 32, %s13
      $region44: #{tpu_custom_call.1} parent=39 // pred_fallthru
        _
    $region40: #{tpu_custom_call.1} parent=5 // pred_fallthru
      _
    %p237 = scmp.le.s32.totalorder 1, %s13
    %p238 = scmp.lt.s32.totalorder %s13, 3
    %p239 = pnand %p237, %p238
    %p240 = pneg %p239
    // Predicated region
    $region45: #{tpu_custom_call.1} parent=5 // pred_check
      _
    $region46: #{tpu_custom_call.1} parent=5 // pred_check_branch
      %242 = sbr.rel (%p239) target = $region48
    $region47: #{tpu_custom_call.1} parent=5 // pred_region
      %s243 = ssub.s32 %s13, 1
      %s244 = smul.u32 32, %s18
      %p245 = scmp.lt.s32.totalorder %s244, 63
      %s246 = scalar_select %p245, %s244, 63
      %s247 = smul.addr %s246, 4
      %s248 = scalar_lea.vmem %s0, %s247
      %p249 = pneg %p39
      %p250 = pneg %p36
      %p251 = pneg %p60
      %p252 = pneg %p57
      %p253 = pneg %p81
      %p254 = pneg %p78
      %p255 = pneg %p102
      %p256 = pneg %p99
      %p257 = pneg %p123
      %p258 = pneg %p120
      %p259 = pneg %p144
      %p260 = pneg %p141
      %p261 = pneg %p165
      %p262 = pneg %p162
      %p263 = pneg %p191
      %p264 = pneg %p188
      %s265 = smul.u32 32, %s18
      %p266 = scmp.lt.s32.totalorder %s265, 63
      %s267 = scalar_select %p266, %s265, 63
      %s268 = smul.addr %s267, 8
      %s269 = scalar_lea.vmem %s7, %s268
      %s270 = smul.u32 32, %s18
      %p271 = scmp.lt.s32.totalorder %s270, 63
      %s272 = scalar_select %p271, %s270, 63
      %s273 = smul.addr %s272, 4
      %s274 = scalar_lea.vmem %s0, %s273
      %s275 = smul.u32 32, %s18
      %s276 = smul.u32 32, %s18
      %p277 = scmp.lt.s32.totalorder %s276, 63
      %s278 = scalar_select %p277, %s276, 63
      %s279 = smul.addr %s278, 8
      %s280 = scalar_lea.vmem %s7, %s279
      %s281 = smul.u32 32, %s18
      %v283 = vld [vmem:[%s274] sm:$0xf]
      %v284 = vld [vmem:[%s274 + $0x4] sm:$0xf]
      %v285 = vld [vmem:[%s274 + $0x8] sm:$0xf]
      %v286 = vld [vmem:[%s274 + $0xc] sm:$0xf]
      %v287 = vld [vmem:[%s274 + $0x10] sm:$0xf]
      %v288 = vld [vmem:[%s274 + $0x14] sm:$0xf]
      %v289 = vld [vmem:[%s274 + $0x18] sm:$0xf]
      %v290 = vld [vmem:[%s274 + $0x1c] sm:$0xf]
      %v291 = vld [vmem:[%s274 + $0x20] sm:$0xf]
      %v292 = vld [vmem:[%s274 + $0x24] sm:$0xf]
      %v293 = vld [vmem:[%s274 + $0x28] sm:$0xf]
      %v294 = vld [vmem:[%s274 + $0x2c] sm:$0xf]
      %v295 = vld [vmem:[%s274 + $0x30] sm:$0xf]
      %v296 = vld [vmem:[%s274 + $0x34] sm:$0xf]
      %v297 = vld [vmem:[%s274 + $0x38] sm:$0xf]
      %v298 = vld [vmem:[%s274 + $0x3c] sm:$0xf]
      %v299 = vld [vmem:[%s274 + $0x40] sm:$0xf]
      %v300 = vld [vmem:[%s274 + $0x44] sm:$0xf]
      %v301 = vld [vmem:[%s274 + $0x48] sm:$0xf]
      %v302 = vld [vmem:[%s274 + $0x4c] sm:$0xf]
      %v303 = vld [vmem:[%s274 + $0x50] sm:$0xf]
      %v304 = vld [vmem:[%s274 + $0x54] sm:$0xf]
      %v305 = vld [vmem:[%s274 + $0x58] sm:$0xf]
      %v306 = vld [vmem:[%s274 + $0x5c] sm:$0xf]
      %v307 = vld [vmem:[%s274 + $0x60] sm:$0xf]
      %v308 = vld [vmem:[%s274 + $0x64] sm:$0xf]
      %v309 = vld [vmem:[%s274 + $0x68] sm:$0xf]
      %v310 = vld [vmem:[%s274 + $0x6c] sm:$0xf]
      %v311 = vld [vmem:[%s274 + $0x70] sm:$0xf]
      %v312 = vld [vmem:[%s274 + $0x74] sm:$0xf]
      %v313 = vld [vmem:[%s274 + $0x78] sm:$0xf]
      %v314 = vld [vmem:[%s274 + $0x7c] sm:$0xf]
      %v315 = vld [vmem:[%s1] sm:$0xf]
      %v316 = vld [vmem:[%s1 + $0x4] sm:$0xf]
      %v317 = vld [vmem:[%s2] sm:$0x1]
      %v319 = vperm.slane %v317, 0
      %v353 = vunpack.c.l.b16 %v283
      %v354 = vunpack.c.l.b16 %v284
      %v355 = vunpack.c.l.b16 %v285
      %v356 = vunpack.c.l.b16 %v286
      %v357 = vunpack.c.l.b16 %v287
      %v358 = vunpack.c.l.b16 %v288
      %v359 = vunpack.c.l.b16 %v289
      %v360 = vunpack.c.l.b16 %v290
      %v361 = vunpack.c.l.b16 %v291
      %v362 = vunpack.c.l.b16 %v292
      %v363 = vunpack.c.l.b16 %v293
      %v364 = vunpack.c.l.b16 %v294
      %v365 = vunpack.c.l.b16 %v295
      %v366 = vunpack.c.l.b16 %v296
      %v367 = vunpack.c.l.b16 %v297
      %v368 = vunpack.c.l.b16 %v298
      %v369 = vunpack.c.l.b16 %v299
      %v370 = vunpack.c.l.b16 %v300
      %v371 = vunpack.c.l.b16 %v301
      %v372 = vunpack.c.l.b16 %v302
      %v373 = vunpack.c.l.b16 %v303
      %v374 = vunpack.c.l.b16 %v304
      %v375 = vunpack.c.l.b16 %v305
      %v376 = vunpack.c.l.b16 %v306
      %v377 = vunpack.c.l.b16 %v307
      %v378 = vunpack.c.l.b16 %v308
      %v379 = vunpack.c.l.b16 %v309
      %v380 = vunpack.c.l.b16 %v310
      %v381 = vunpack.c.l.b16 %v311
      %v382 = vunpack.c.l.b16 %v312
      %v383 = vunpack.c.l.b16 %v313
      %v384 = vunpack.c.l.b16 %v314
      %v385 = vpack.c.b16 %v354, %v353
      %v386 = vpack.c.b16 %v356, %v355
      %v387 = vpack.c.b16 %v358, %v357
      %v388 = vpack.c.b16 %v360, %v359
      %v389 = vpack.c.b16 %v362, %v361
      %v390 = vpack.c.b16 %v364, %v363
      %v391 = vpack.c.b16 %v366, %v365
      %v392 = vpack.c.b16 %v368, %v367
      %v393 = vpack.c.b16 %v370, %v369
      %v394 = vpack.c.b16 %v372, %v371
      %v395 = vpack.c.b16 %v374, %v373
      %v396 = vpack.c.b16 %v376, %v375
      %v397 = vpack.c.b16 %v378, %v377
      %v398 = vpack.c.b16 %v380, %v379
      %v399 = vpack.c.b16 %v382, %v381
      %v400 = vpack.c.b16 %v384, %v383
      %v403 = vunpack.c.l.b16 %v315
      %v404 = vunpack.c.l.b16 %v316
      %v405 = vpack.c.b16 %v404, %v403
      %vm407 = vcmask 130048
      %v409 = vsel %vm407, %v385, 0
      %v412 = vsel %vm407, %v386, 0
      %v415 = vsel %vm407, %v387, 0
      %v418 = vsel %vm407, %v388, 0
      %v421 = vsel %vm407, %v389, 0
      %v424 = vsel %vm407, %v390, 0
      %v427 = vsel %vm407, %v391, 0
      %v430 = vsel %vm407, %v392, 0
      %v433 = vsel %vm407, %v393, 0
      %v436 = vsel %vm407, %v394, 0
      %v439 = vsel %vm407, %v395, 0
      %v442 = vsel %vm407, %v396, 0
      %v445 = vsel %vm407, %v397, 0
      %v448 = vsel %vm407, %v398, 0
      %v451 = vsel %vm407, %v399, 0
      %v454 = vsel %vm407, %v400, 0
      %456 = vmatpush.bf16.msra.mxu0 0
      %457 = vmatpush.bf16.msra.mxu0 0
      %458 = vmatpush.bf16.msra.mxu0 0
      %459 = vmatpush.bf16.msra.mxu0 0
      %460 = vmatpush.bf16.msra.mxu0 0
      %461 = vmatpush.bf16.msra.mxu0 0
      %462 = vmatpush.bf16.msra.mxu0 0
      %463 = vmatpush.bf16.msra.mxu0 %v405
      %464 = vmatmul.bf16.gmra.mxu0 %v409
      %v465 = vpop.f32.mrf.mxu0
      %v466 = vadd.f32 %v319, %v465
      %v467 = vpop.f32.mrf.mxu0
      %v468 = vadd.f32 %v319, %v467
      %469 = vmatmul.bf16.gmra.mxu0 %v412
      %v470 = vpop.f32.mrf.mxu0
      %v471 = vadd.f32 %v319, %v470
      %v472 = vpop.f32.mrf.mxu0
      %v473 = vadd.f32 %v319, %v472
      %474 = vmatmul.bf16.gmra.mxu0 %v415
      %v475 = vpop.f32.mrf.mxu0
      %v476 = vadd.f32 %v319, %v475
      %v477 = vpop.f32.mrf.mxu0
      %v478 = vadd.f32 %v319, %v477
      %479 = vmatmul.bf16.gmra.mxu0 %v418
      %v480 = vpop.f32.mrf.mxu0
      %v481 = vadd.f32 %v319, %v480
      %v482 = vpop.f32.mrf.mxu0
      %v483 = vadd.f32 %v319, %v482
      %484 = vmatmul.bf16.gmra.mxu0 %v421
      %v485 = vpop.f32.mrf.mxu0
      %v486 = vadd.f32 %v319, %v485
      %v487 = vpop.f32.mrf.mxu0
      %v488 = vadd.f32 %v319, %v487
      %489 = vmatmul.bf16.gmra.mxu0 %v424
      %v490 = vpop.f32.mrf.mxu0
      %v491 = vadd.f32 %v319, %v490
      %v492 = vpop.f32.mrf.mxu0
      %v493 = vadd.f32 %v319, %v492
      %494 = vmatmul.bf16.gmra.mxu0 %v427
      %v495 = vpop.f32.mrf.mxu0
      %v496 = vadd.f32 %v319, %v495
      %v497 = vpop.f32.mrf.mxu0
      %v498 = vadd.f32 %v319, %v497
      %499 = vmatmul.bf16.gmra.mxu0 %v430
      %v500 = vpop.f32.mrf.mxu0
      %v501 = vadd.f32 %v319, %v500
      %v502 = vpop.f32.mrf.mxu0
      %v503 = vadd.f32 %v319, %v502
      %504 = vmatmul.bf16.gmra.mxu0 %v433
      %v505 = vpop.f32.mrf.mxu0
      %v506 = vadd.f32 %v319, %v505
      %v507 = vpop.f32.mrf.mxu0
      %v508 = vadd.f32 %v319, %v507
      %509 = vmatmul.bf16.gmra.mxu0 %v436
      %v510 = vpop.f32.mrf.mxu0
      %v511 = vadd.f32 %v319, %v510
      %v512 = vpop.f32.mrf.mxu0
      %v513 = vadd.f32 %v319, %v512
      %514 = vmatmul.bf16.gmra.mxu0 %v439
      %v515 = vpop.f32.mrf.mxu0
      %v516 = vadd.f32 %v319, %v515
      %v517 = vpop.f32.mrf.mxu0
      %v518 = vadd.f32 %v319, %v517
      %519 = vmatmul.bf16.gmra.mxu0 %v442
      %v520 = vpop.f32.mrf.mxu0
      %v521 = vadd.f32 %v319, %v520
      %v522 = vpop.f32.mrf.mxu0
      %v523 = vadd.f32 %v319, %v522
      %524 = vmatmul.bf16.gmra.mxu0 %v445
      %v525 = vpop.f32.mrf.mxu0
      %v526 = vadd.f32 %v319, %v525
      %v527 = vpop.f32.mrf.mxu0
      %v528 = vadd.f32 %v319, %v527
      %529 = vmatmul.bf16.gmra.mxu0 %v448
      %v530 = vpop.f32.mrf.mxu0
      %v531 = vadd.f32 %v319, %v530
      %v532 = vpop.f32.mrf.mxu0
      %v533 = vadd.f32 %v319, %v532
      %534 = vmatmul.bf16.gmra.mxu0 %v451
      %v535 = vpop.f32.mrf.mxu0
      %v536 = vadd.f32 %v319, %v535
      %v537 = vpop.f32.mrf.mxu0
      %v538 = vadd.f32 %v319, %v537
      %539 = vmatmul.bf16.gmra.mxu0 %v454
      %v540 = vpop.f32.mrf.mxu0
      %v541 = vadd.f32 %v319, %v540
      %v542 = vpop.f32.mrf.mxu0
      %v543 = vadd.f32 %v319, %v542
      %544 = vdwg.mxu0
      %v545 = vmax.f32 %v466, 0.0
      %v546 = vmax.f32 %v468, 0.0
      %v547 = vmax.f32 %v471, 0.0
      %v548 = vmax.f32 %v473, 0.0
      %v549 = vmax.f32 %v476, 0.0
      %v550 = vmax.f32 %v478, 0.0
      %v551 = vmax.f32 %v481, 0.0
      %v552 = vmax.f32 %v483, 0.0
      %v553 = vmax.f32 %v486, 0.0
      %v554 = vmax.f32 %v488, 0.0
      %v555 = vmax.f32 %v491, 0.0
      %v556 = vmax.f32 %v493, 0.0
      %v557 = vmax.f32 %v496, 0.0
      %v558 = vmax.f32 %v498, 0.0
      %v559 = vmax.f32 %v501, 0.0
      %v560 = vmax.f32 %v503, 0.0
      %v561 = vmax.f32 %v506, 0.0
      %v562 = vmax.f32 %v508, 0.0
      %v563 = vmax.f32 %v511, 0.0
      %v564 = vmax.f32 %v513, 0.0
      %v565 = vmax.f32 %v516, 0.0
      %v566 = vmax.f32 %v518, 0.0
      %v567 = vmax.f32 %v521, 0.0
      %v568 = vmax.f32 %v523, 0.0
      %v569 = vmax.f32 %v526, 0.0
      %v570 = vmax.f32 %v528, 0.0
      %v571 = vmax.f32 %v531, 0.0
      %v572 = vmax.f32 %v533, 0.0
      %v573 = vmax.f32 %v536, 0.0
      %v574 = vmax.f32 %v538, 0.0
      %v575 = vmax.f32 %v541, 0.0
      %v576 = vmax.f32 %v543, 0.0
      %v577 = vpack.c.bf16 %v546, %v545
      %v578 = vpack.c.bf16 %v548, %v547
      %v579 = vpack.c.bf16 %v550, %v549
      %v580 = vpack.c.bf16 %v552, %v551
      %v581 = vpack.c.bf16 %v554, %v553
      %v582 = vpack.c.bf16 %v556, %v555
      %v583 = vpack.c.bf16 %v558, %v557
      %v584 = vpack.c.bf16 %v560, %v559
      %v585 = vpack.c.bf16 %v562, %v561
      %v586 = vpack.c.bf16 %v564, %v563
      %v587 = vpack.c.bf16 %v566, %v565
      %v588 = vpack.c.bf16 %v568, %v567
      %v589 = vpack.c.bf16 %v570, %v569
      %v590 = vpack.c.bf16 %v572, %v571
      %v591 = vpack.c.bf16 %v574, %v573
      %v592 = vpack.c.bf16 %v576, %v575
      %v593 = vld [vmem:[%s3] sm:$0xf]
      %v594 = vld [vmem:[%s3 + $0x4] sm:$0xf]
      %v595 = vld [vmem:[%s3 + $0x8] sm:$0xf]
      %v596 = vld [vmem:[%s3 + $0xc] sm:$0xf]
      %v597 = vld [vmem:[%s3 + $0x10] sm:$0xf]
      %v598 = vld [vmem:[%s3 + $0x14] sm:$0xf]
      %v599 = vld [vmem:[%s3 + $0x18] sm:$0xf]
      %v600 = vld [vmem:[%s3 + $0x1c] sm:$0xf]
      %v601 = vld [vmem:[%s3 + $0x20] sm:$0xf]
      %v602 = vld [vmem:[%s3 + $0x24] sm:$0xf]
      %v603 = vld [vmem:[%s3 + $0x28] sm:$0xf]
      %v604 = vld [vmem:[%s3 + $0x2c] sm:$0xf]
      %v605 = vld [vmem:[%s3 + $0x30] sm:$0xf]
      %v606 = vld [vmem:[%s3 + $0x34] sm:$0xf]
      %v607 = vld [vmem:[%s3 + $0x38] sm:$0xf]
      %v608 = vld [vmem:[%s3 + $0x3c] sm:$0xf]
      %v609 = vld [vmem:[%s4] sm:$0x1]
      %v611 = vperm.slane %v609, 0
      %v629 = vunpack.c.l.b16 %v593
      %v630 = vunpack.c.l.b16 %v594
      %v631 = vunpack.c.l.b16 %v595
      %v632 = vunpack.c.l.b16 %v596
      %v633 = vunpack.c.l.b16 %v597
      %v634 = vunpack.c.l.b16 %v598
      %v635 = vunpack.c.l.b16 %v599
      %v636 = vunpack.c.l.b16 %v600
      %v637 = vunpack.c.l.b16 %v601
      %v638 = vunpack.c.l.b16 %v602
      %v639 = vunpack.c.l.b16 %v603
      %v640 = vunpack.c.l.b16 %v604
      %v641 = vunpack.c.l.b16 %v605
      %v642 = vunpack.c.l.b16 %v606
      %v643 = vunpack.c.l.b16 %v607
      %v644 = vunpack.c.l.b16 %v608
      %v645 = vpack.c.b16 %v630, %v629
      %v646 = vpack.c.b16 %v632, %v631
      %v647 = vpack.c.b16 %v634, %v633
      %v648 = vpack.c.b16 %v636, %v635
      %v649 = vpack.c.b16 %v638, %v637
      %v650 = vpack.c.b16 %v640, %v639
      %v651 = vpack.c.b16 %v642, %v641
      %v652 = vpack.c.b16 %v644, %v643
      %661 = vmatpush.bf16.msra.mxu0 %v652
      %662 = vmatpush.bf16.msra.mxu0 %v651
      %663 = vmatpush.bf16.msra.mxu0 %v650
      %664 = vmatpush.bf16.msra.mxu0 %v649
      %665 = vmatpush.bf16.msra.mxu0 %v648
      %666 = vmatpush.bf16.msra.mxu0 %v647
      %667 = vmatpush.bf16.msra.mxu0 %v646
      %668 = vmatpush.bf16.msra.mxu0 %v645
      %669 = vmatmul.bf16.gmra.mxu0 %v577
      %v670 = vpop.f32.mrf.mxu0
      %v671 = vadd.f32 %v611, %v670
      %v672 = vpop.f32.mrf.mxu0
      %v673 = vadd.f32 %v611, %v672
      %674 = vmatmul.bf16.gmra.mxu0 %v578
      %v675 = vpop.f32.mrf.mxu0
      %v676 = vadd.f32 %v611, %v675
      %v677 = vpop.f32.mrf.mxu0
      %v678 = vadd.f32 %v611, %v677
      %679 = vmatmul.bf16.gmra.mxu0 %v579
      %v680 = vpop.f32.mrf.mxu0
      %v681 = vadd.f32 %v611, %v680
      %v682 = vpop.f32.mrf.mxu0
      %v683 = vadd.f32 %v611, %v682
      %684 = vmatmul.bf16.gmra.mxu0 %v580
      %v685 = vpop.f32.mrf.mxu0
      %v686 = vadd.f32 %v611, %v685
      %v687 = vpop.f32.mrf.mxu0
      %v688 = vadd.f32 %v611, %v687
      %689 = vmatmul.bf16.gmra.mxu0 %v581
      %v690 = vpop.f32.mrf.mxu0
      %v691 = vadd.f32 %v611, %v690
      %v692 = vpop.f32.mrf.mxu0
      %v693 = vadd.f32 %v611, %v692
      %694 = vmatmul.bf16.gmra.mxu0 %v582
      %v695 = vpop.f32.mrf.mxu0
      %v696 = vadd.f32 %v611, %v695
      %v697 = vpop.f32.mrf.mxu0
      %v698 = vadd.f32 %v611, %v697
      %699 = vmatmul.bf16.gmra.mxu0 %v583
      %v700 = vpop.f32.mrf.mxu0
      %v701 = vadd.f32 %v611, %v700
      %v702 = vpop.f32.mrf.mxu0
      %v703 = vadd.f32 %v611, %v702
      %704 = vmatmul.bf16.gmra.mxu0 %v584
      %v705 = vpop.f32.mrf.mxu0
      %v706 = vadd.f32 %v611, %v705
      %v707 = vpop.f32.mrf.mxu0
      %v708 = vadd.f32 %v611, %v707
      %709 = vmatmul.bf16.gmra.mxu0 %v585
      %v710 = vpop.f32.mrf.mxu0
      %v711 = vadd.f32 %v611, %v710
      %v712 = vpop.f32.mrf.mxu0
      %v713 = vadd.f32 %v611, %v712
      %714 = vmatmul.bf16.gmra.mxu0 %v586
      %v715 = vpop.f32.mrf.mxu0
      %v716 = vadd.f32 %v611, %v715
      %v717 = vpop.f32.mrf.mxu0
      %v718 = vadd.f32 %v611, %v717
      %719 = vmatmul.bf16.gmra.mxu0 %v587
      %v720 = vpop.f32.mrf.mxu0
      %v721 = vadd.f32 %v611, %v720
      %v722 = vpop.f32.mrf.mxu0
      %v723 = vadd.f32 %v611, %v722
      %724 = vmatmul.bf16.gmra.mxu0 %v588
      %v725 = vpop.f32.mrf.mxu0
      %v726 = vadd.f32 %v611, %v725
      %v727 = vpop.f32.mrf.mxu0
      %v728 = vadd.f32 %v611, %v727
      %729 = vmatmul.bf16.gmra.mxu0 %v589
      %v730 = vpop.f32.mrf.mxu0
      %v731 = vadd.f32 %v611, %v730
      %v732 = vpop.f32.mrf.mxu0
      %v733 = vadd.f32 %v611, %v732
      %734 = vmatmul.bf16.gmra.mxu0 %v590
      %v735 = vpop.f32.mrf.mxu0
      %v736 = vadd.f32 %v611, %v735
      %v737 = vpop.f32.mrf.mxu0
      %v738 = vadd.f32 %v611, %v737
      %739 = vmatmul.bf16.gmra.mxu0 %v591
      %v740 = vpop.f32.mrf.mxu0
      %v741 = vadd.f32 %v611, %v740
      %v742 = vpop.f32.mrf.mxu0
      %v743 = vadd.f32 %v611, %v742
      %744 = vmatmul.bf16.gmra.mxu0 %v592
      %v745 = vpop.f32.mrf.mxu0
      %v746 = vadd.f32 %v611, %v745
      %v747 = vpop.f32.mrf.mxu0
      %v748 = vadd.f32 %v611, %v747
      %749 = vdwg.mxu0
      %v750 = vmax.f32 %v671, 0.0
      %v751 = vmax.f32 %v673, 0.0
      %v752 = vmax.f32 %v676, 0.0
      %v753 = vmax.f32 %v678, 0.0
      %v754 = vmax.f32 %v681, 0.0
      %v755 = vmax.f32 %v683, 0.0
      %v756 = vmax.f32 %v686, 0.0
      %v757 = vmax.f32 %v688, 0.0
      %v758 = vmax.f32 %v691, 0.0
      %v759 = vmax.f32 %v693, 0.0
      %v760 = vmax.f32 %v696, 0.0
      %v761 = vmax.f32 %v698, 0.0
      %v762 = vmax.f32 %v701, 0.0
      %v763 = vmax.f32 %v703, 0.0
      %v764 = vmax.f32 %v706, 0.0
      %v765 = vmax.f32 %v708, 0.0
      %v766 = vmax.f32 %v711, 0.0
      %v767 = vmax.f32 %v713, 0.0
      %v768 = vmax.f32 %v716, 0.0
      %v769 = vmax.f32 %v718, 0.0
      %v770 = vmax.f32 %v721, 0.0
      %v771 = vmax.f32 %v723, 0.0
      %v772 = vmax.f32 %v726, 0.0
      %v773 = vmax.f32 %v728, 0.0
      %v774 = vmax.f32 %v731, 0.0
      %v775 = vmax.f32 %v733, 0.0
      %v776 = vmax.f32 %v736, 0.0
      %v777 = vmax.f32 %v738, 0.0
      %v778 = vmax.f32 %v741, 0.0
      %v779 = vmax.f32 %v743, 0.0
      %v780 = vmax.f32 %v746, 0.0
      %v781 = vmax.f32 %v748, 0.0
      %v782 = vpack.c.bf16 %v751, %v750
      %v783 = vpack.c.bf16 %v753, %v752
      %v784 = vpack.c.bf16 %v755, %v754
      %v785 = vpack.c.bf16 %v757, %v756
      %v786 = vpack.c.bf16 %v759, %v758
      %v787 = vpack.c.bf16 %v761, %v760
      %v788 = vpack.c.bf16 %v763, %v762
      %v789 = vpack.c.bf16 %v765, %v764
      %v790 = vpack.c.bf16 %v767, %v766
      %v791 = vpack.c.bf16 %v769, %v768
      %v792 = vpack.c.bf16 %v771, %v770
      %v793 = vpack.c.bf16 %v773, %v772
      %v794 = vpack.c.bf16 %v775, %v774
      %v795 = vpack.c.bf16 %v777, %v776
      %v796 = vpack.c.bf16 %v779, %v778
      %v797 = vpack.c.bf16 %v781, %v780
      %v798 = vld [vmem:[%s5] sm:$0xf]
      %v799 = vld [vmem:[%s5 + $0x4] sm:$0xf]
      %v800 = vld [vmem:[%s5 + $0x8] sm:$0xf]
      %v801 = vld [vmem:[%s5 + $0xc] sm:$0xf]
      %v802 = vld [vmem:[%s5 + $0x10] sm:$0xf]
      %v803 = vld [vmem:[%s5 + $0x14] sm:$0xf]
      %v804 = vld [vmem:[%s5 + $0x18] sm:$0xf]
      %v805 = vld [vmem:[%s5 + $0x1c] sm:$0xf]
      %v806 = vld [vmem:[%s5 + $0x20] sm:$0xf]
      %v807 = vld [vmem:[%s5 + $0x24] sm:$0xf]
      %v808 = vld [vmem:[%s5 + $0x28] sm:$0xf]
      %v809 = vld [vmem:[%s5 + $0x2c] sm:$0xf]
      %v810 = vld [vmem:[%s5 + $0x30] sm:$0xf]
      %v811 = vld [vmem:[%s5 + $0x34] sm:$0xf]
      %v812 = vld [vmem:[%s5 + $0x38] sm:$0xf]
      %v813 = vld [vmem:[%s5 + $0x3c] sm:$0xf]
      %v814 = vld [vmem:[%s6] sm:$0x1]
      %v816 = vperm.slane %v814, 0
      %v834 = vunpack.c.l.b16 %v798
      %v835 = vunpack.c.l.b16 %v799
      %v836 = vunpack.c.l.b16 %v800
      %v837 = vunpack.c.l.b16 %v801
      %v838 = vunpack.c.l.b16 %v802
      %v839 = vunpack.c.l.b16 %v803
      %v840 = vunpack.c.l.b16 %v804
      %v841 = vunpack.c.l.b16 %v805
      %v842 = vunpack.c.l.b16 %v806
      %v843 = vunpack.c.l.b16 %v807
      %v844 = vunpack.c.l.b16 %v808
      %v845 = vunpack.c.l.b16 %v809
      %v846 = vunpack.c.l.b16 %v810
      %v847 = vunpack.c.l.b16 %v811
      %v848 = vunpack.c.l.b16 %v812
      %v849 = vunpack.c.l.b16 %v813
      %v850 = vpack.c.b16 %v835, %v834
      %v851 = vpack.c.b16 %v837, %v836
      %v852 = vpack.c.b16 %v839, %v838
      %v853 = vpack.c.b16 %v841, %v840
      %v854 = vpack.c.b16 %v843, %v842
      %v855 = vpack.c.b16 %v845, %v844
      %v856 = vpack.c.b16 %v847, %v846
      %v857 = vpack.c.b16 %v849, %v848
      %866 = vmatpush.bf16.msra.mxu0 %v857
      %867 = vmatpush.bf16.msra.mxu0 %v856
      %868 = vmatpush.bf16.msra.mxu0 %v855
      %869 = vmatpush.bf16.msra.mxu0 %v854
      %870 = vmatpush.bf16.msra.mxu0 %v853
      %871 = vmatpush.bf16.msra.mxu0 %v852
      %872 = vmatpush.bf16.msra.mxu0 %v851
      %873 = vmatpush.bf16.msra.mxu0 %v850
      %874 = vmatmul.bf16.gmra.mxu0 %v782
      %v875 = vpop.f32.mrf.mxu0
      %v876 = vadd.f32 %v816, %v875
      %v877 = vpop.f32.mrf.mxu0
      %v878 = vadd.f32 %v816, %v877
      %879 = vmatmul.bf16.gmra.mxu0 %v783
      %v880 = vpop.f32.mrf.mxu0
      %v881 = vadd.f32 %v816, %v880
      %v882 = vpop.f32.mrf.mxu0
      %v883 = vadd.f32 %v816, %v882
      %884 = vmatmul.bf16.gmra.mxu0 %v784
      %v885 = vpop.f32.mrf.mxu0
      %v886 = vadd.f32 %v816, %v885
      %v887 = vpop.f32.mrf.mxu0
      %v888 = vadd.f32 %v816, %v887
      %889 = vmatmul.bf16.gmra.mxu0 %v785
      %v890 = vpop.f32.mrf.mxu0
      %v891 = vadd.f32 %v816, %v890
      %v892 = vpop.f32.mrf.mxu0
      %v893 = vadd.f32 %v816, %v892
      %894 = vmatmul.bf16.gmra.mxu0 %v786
      %v895 = vpop.f32.mrf.mxu0
      %v896 = vadd.f32 %v816, %v895
      %v897 = vpop.f32.mrf.mxu0
      %v898 = vadd.f32 %v816, %v897
      %899 = vmatmul.bf16.gmra.mxu0 %v787
      %v900 = vpop.f32.mrf.mxu0
      %v901 = vadd.f32 %v816, %v900
      %v902 = vpop.f32.mrf.mxu0
      %v903 = vadd.f32 %v816, %v902
      %904 = vmatmul.bf16.gmra.mxu0 %v788
      %v905 = vpop.f32.mrf.mxu0
      %v906 = vadd.f32 %v816, %v905
      %v907 = vpop.f32.mrf.mxu0
      %v908 = vadd.f32 %v816, %v907
      %909 = vmatmul.bf16.gmra.mxu0 %v789
      %v910 = vpop.f32.mrf.mxu0
      %v911 = vadd.f32 %v816, %v910
      %v912 = vpop.f32.mrf.mxu0
      %v913 = vadd.f32 %v816, %v912
      %914 = vmatmul.bf16.gmra.mxu0 %v790
      %v915 = vpop.f32.mrf.mxu0
      %v916 = vadd.f32 %v816, %v915
      %v917 = vpop.f32.mrf.mxu0
      %v918 = vadd.f32 %v816, %v917
      %919 = vmatmul.bf16.gmra.mxu0 %v791
      %v920 = vpop.f32.mrf.mxu0
      %v921 = vadd.f32 %v816, %v920
      %v922 = vpop.f32.mrf.mxu0
      %v923 = vadd.f32 %v816, %v922
      %924 = vmatmul.bf16.gmra.mxu0 %v792
      %v925 = vpop.f32.mrf.mxu0
      %v926 = vadd.f32 %v816, %v925
      %v927 = vpop.f32.mrf.mxu0
      %v928 = vadd.f32 %v816, %v927
      %929 = vmatmul.bf16.gmra.mxu0 %v793
      %v930 = vpop.f32.mrf.mxu0
      %v931 = vadd.f32 %v816, %v930
      %v932 = vpop.f32.mrf.mxu0
      %v933 = vadd.f32 %v816, %v932
      %934 = vmatmul.bf16.gmra.mxu0 %v794
      %v935 = vpop.f32.mrf.mxu0
      %v936 = vadd.f32 %v816, %v935
      %v937 = vpop.f32.mrf.mxu0
      %v938 = vadd.f32 %v816, %v937
      %939 = vmatmul.bf16.gmra.mxu0 %v795
      %v940 = vpop.f32.mrf.mxu0
      %v941 = vadd.f32 %v816, %v940
      %v942 = vpop.f32.mrf.mxu0
      %v943 = vadd.f32 %v816, %v942
      %944 = vmatmul.bf16.gmra.mxu0 %v796
      %v945 = vpop.f32.mrf.mxu0
      %v946 = vadd.f32 %v816, %v945
      %v947 = vpop.f32.mrf.mxu0
      %v948 = vadd.f32 %v816, %v947
      %949 = vmatmul.bf16.gmra.mxu0 %v797
      %v950 = vpop.f32.mrf.mxu0
      %v951 = vadd.f32 %v816, %v950
      %v952 = vpop.f32.mrf.mxu0
      %v953 = vadd.f32 %v816, %v952
      %954 = vdwg.mxu0
      %v955 = vlaneseq
      %v956 = vand.u32 %v955, 127
      %vm957 = vcmp.lt.s32.totalorder %v956, 2
      %v958 = vsel %vm407, %v876, 0.0
      %v959 = vsel %vm407, %v878, 0.0
      %v960 = vadd.f32 %v958, %v959
      %v961 = vsel %vm407, %v881, 0.0
      %v962 = vadd.f32 %v960, %v961
      %v963 = vsel %vm407, %v883, 0.0
      %v964 = vadd.f32 %v962, %v963
      %v965 = vsel %vm407, %v886, 0.0
      %v966 = vadd.f32 %v964, %v965
      %v967 = vsel %vm407, %v888, 0.0
      %v968 = vadd.f32 %v966, %v967
      %v969 = vsel %vm407, %v891, 0.0
      %v970 = vadd.f32 %v968, %v969
      %v971 = vsel %vm407, %v893, 0.0
      %v972 = vadd.f32 %v970, %v971
      %v973 = vrot.slane %v972, 4
      %v974 = vadd.f32 %v972, %v973
      %v975 = vrot.slane %v974, 2
      %v976 = vadd.f32 %v974, %v975
      %v977 = vrot.slane %v976, 1
      %v978 = vadd.f32 %v976, %v977
      %v979 = vmul.f32 %v978, 0.015625
      %v980 = vsel %vm957, %v979, 0.0
      %v981 = vsub.f32 %v876, %v980
      %v982 = vsub.f32 %v878, %v980
      %v983 = vsub.f32 %v881, %v980
      %v984 = vsub.f32 %v883, %v980
      %v985 = vsub.f32 %v886, %v980
      %v986 = vsub.f32 %v888, %v980
      %v987 = vsub.f32 %v891, %v980
      %v988 = vsub.f32 %v893, %v980
      %v989 = vmul.f32 %v981, 0.1
      %v990 = vmul.f32 %v982, 0.1
      %v991 = vmul.f32 %v983, 0.1
      %v992 = vmul.f32 %v984, 0.1
      %v993 = vmul.f32 %v985, 0.1
      %v994 = vmul.f32 %v986, 0.1
      %v995 = vmul.f32 %v987, 0.1
      %v996 = vmul.f32 %v988, 0.1
      %v997 = vtanh.pop %v989
      %v998 = vtanh.pop %v990
      %v999 = vtanh.pop %v991
      %v1000 = vtanh.pop %v992
      %v1001 = vtanh.pop %v993
      %v1002 = vtanh.pop %v994
      %v1003 = vtanh.pop %v995
      %v1004 = vtanh.pop %v996
      %v1005 = vmul.f32 %v997, 5.0
      %v1006 = vmul.f32 %v998, 5.0
      %v1007 = vmul.f32 %v999, 5.0
      %v1008 = vmul.f32 %v1000, 5.0
      %v1009 = vmul.f32 %v1001, 5.0
      %v1010 = vmul.f32 %v1002, 5.0
      %v1011 = vmul.f32 %v1003, 5.0
      %v1012 = vmul.f32 %v1004, 5.0
      %1013 = vst.msk [vmem:[%s280] sm:$0xff] %vm407, %v1005
      %1014 = vst.msk [vmem:[%s280 + $0x8] sm:$0xff] %vm407, %v1006
      %1015 = vst.msk [vmem:[%s280 + $0x10] sm:$0xff] %vm407, %v1007
      %1016 = vst.msk [vmem:[%s280 + $0x18] sm:$0xff] %vm407, %v1008
      %1017 = vst.msk [vmem:[%s280 + $0x20] sm:$0xff] %vm407, %v1009
      %1018 = vst.msk [vmem:[%s280 + $0x28] sm:$0xff] %vm407, %v1010
      %1019 = vst.msk [vmem:[%s280 + $0x30] sm:$0xff] %vm407, %v1011
      %1020 = vst.msk [vmem:[%s280 + $0x38] sm:$0xff] %vm407, %v1012
      %v1021 = vsel %vm407, %v896, 0.0
      %v1022 = vsel %vm407, %v898, 0.0
      %v1023 = vadd.f32 %v1021, %v1022
      %v1024 = vsel %vm407, %v901, 0.0
      %v1025 = vadd.f32 %v1023, %v1024
      %v1026 = vsel %vm407, %v903, 0.0
      %v1027 = vadd.f32 %v1025, %v1026
      %v1028 = vsel %vm407, %v906, 0.0
      %v1029 = vadd.f32 %v1027, %v1028
      %v1030 = vsel %vm407, %v908, 0.0
      %v1031 = vadd.f32 %v1029, %v1030
      %v1032 = vsel %vm407, %v911, 0.0
      %v1033 = vadd.f32 %v1031, %v1032
      %v1034 = vsel %vm407, %v913, 0.0
      %v1035 = vadd.f32 %v1033, %v1034
      %v1036 = vrot.slane %v1035, 4
      %v1037 = vadd.f32 %v1035, %v1036
      %v1038 = vrot.slane %v1037, 2
      %v1039 = vadd.f32 %v1037, %v1038
      %v1040 = vrot.slane %v1039, 1
      %v1041 = vadd.f32 %v1039, %v1040
      %v1042 = vmul.f32 %v1041, 0.015625
      %v1043 = vsel %vm957, %v1042, 0.0
      %v1044 = vsub.f32 %v896, %v1043
      %v1045 = vsub.f32 %v898, %v1043
      %v1046 = vsub.f32 %v901, %v1043
      %v1047 = vsub.f32 %v903, %v1043
      %v1048 = vsub.f32 %v906, %v1043
      %v1049 = vsub.f32 %v908, %v1043
      %v1050 = vsub.f32 %v911, %v1043
      %v1051 = vsub.f32 %v913, %v1043
      %v1052 = vmul.f32 %v1044, 0.1
      %v1053 = vmul.f32 %v1045, 0.1
      %v1054 = vmul.f32 %v1046, 0.1
      %v1055 = vmul.f32 %v1047, 0.1
      %v1056 = vmul.f32 %v1048, 0.1
      %v1057 = vmul.f32 %v1049, 0.1
      %v1058 = vmul.f32 %v1050, 0.1
      %v1059 = vmul.f32 %v1051, 0.1
      %v1060 = vtanh.pop %v1052
      %v1061 = vtanh.pop %v1053
      %v1062 = vtanh.pop %v1054
      %v1063 = vtanh.pop %v1055
      %v1064 = vtanh.pop %v1056
      %v1065 = vtanh.pop %v1057
      %v1066 = vtanh.pop %v1058
      %v1067 = vtanh.pop %v1059
      %v1068 = vmul.f32 %v1060, 5.0
      %v1069 = vmul.f32 %v1061, 5.0
      %v1070 = vmul.f32 %v1062, 5.0
      %v1071 = vmul.f32 %v1063, 5.0
      %v1072 = vmul.f32 %v1064, 5.0
      %v1073 = vmul.f32 %v1065, 5.0
      %v1074 = vmul.f32 %v1066, 5.0
      %v1075 = vmul.f32 %v1067, 5.0
      %1076 = vst.msk [vmem:[%s280 + $0x40] sm:$0xff] %vm407, %v1068
      %1077 = vst.msk [vmem:[%s280 + $0x48] sm:$0xff] %vm407, %v1069
      %1078 = vst.msk [vmem:[%s280 + $0x50] sm:$0xff] %vm407, %v1070
      %1079 = vst.msk [vmem:[%s280 + $0x58] sm:$0xff] %vm407, %v1071
      %1080 = vst.msk [vmem:[%s280 + $0x60] sm:$0xff] %vm407, %v1072
      %1081 = vst.msk [vmem:[%s280 + $0x68] sm:$0xff] %vm407, %v1073
      %1082 = vst.msk [vmem:[%s280 + $0x70] sm:$0xff] %vm407, %v1074
      %1083 = vst.msk [vmem:[%s280 + $0x78] sm:$0xff] %vm407, %v1075
      %v1084 = vsel %vm407, %v916, 0.0
      %v1085 = vsel %vm407, %v918, 0.0
      %v1086 = vadd.f32 %v1084, %v1085
      %v1087 = vsel %vm407, %v921, 0.0
      %v1088 = vadd.f32 %v1086, %v1087
      %v1089 = vsel %vm407, %v923, 0.0
      %v1090 = vadd.f32 %v1088, %v1089
      %v1091 = vsel %vm407, %v926, 0.0
      %v1092 = vadd.f32 %v1090, %v1091
      %v1093 = vsel %vm407, %v928, 0.0
      %v1094 = vadd.f32 %v1092, %v1093
      %v1095 = vsel %vm407, %v931, 0.0
      %v1096 = vadd.f32 %v1094, %v1095
      %v1097 = vsel %vm407, %v933, 0.0
      %v1098 = vadd.f32 %v1096, %v1097
      %v1099 = vrot.slane %v1098, 4
      %v1100 = vadd.f32 %v1098, %v1099
      %v1101 = vrot.slane %v1100, 2
      %v1102 = vadd.f32 %v1100, %v1101
      %v1103 = vrot.slane %v1102, 1
      %v1104 = vadd.f32 %v1102, %v1103
      %v1105 = vmul.f32 %v1104, 0.015625
      %v1106 = vsel %vm957, %v1105, 0.0
      %v1107 = vsub.f32 %v916, %v1106
      %v1108 = vsub.f32 %v918, %v1106
      %v1109 = vsub.f32 %v921, %v1106
      %v1110 = vsub.f32 %v923, %v1106
      %v1111 = vsub.f32 %v926, %v1106
      %v1112 = vsub.f32 %v928, %v1106
      %v1113 = vsub.f32 %v931, %v1106
      %v1114 = vsub.f32 %v933, %v1106
      %v1115 = vmul.f32 %v1107, 0.1
      %v1116 = vmul.f32 %v1108, 0.1
      %v1117 = vmul.f32 %v1109, 0.1
      %v1118 = vmul.f32 %v1110, 0.1
      %v1119 = vmul.f32 %v1111, 0.1
      %v1120 = vmul.f32 %v1112, 0.1
      %v1121 = vmul.f32 %v1113, 0.1
      %v1122 = vmul.f32 %v1114, 0.1
      %v1123 = vtanh.pop %v1115
      %v1124 = vtanh.pop %v1116
      %v1125 = vtanh.pop %v1117
      %v1126 = vtanh.pop %v1118
      %v1127 = vtanh.pop %v1119
      %v1128 = vtanh.pop %v1120
      %v1129 = vtanh.pop %v1121
      %v1130 = vtanh.pop %v1122
      %v1131 = vmul.f32 %v1123, 5.0
      %v1132 = vmul.f32 %v1124, 5.0
      %v1133 = vmul.f32 %v1125, 5.0
      %v1134 = vmul.f32 %v1126, 5.0
      %v1135 = vmul.f32 %v1127, 5.0
      %v1136 = vmul.f32 %v1128, 5.0
      %v1137 = vmul.f32 %v1129, 5.0
      %v1138 = vmul.f32 %v1130, 5.0
      %1139 = vst.msk [vmem:[%s280 + $0x80] sm:$0xff] %vm407, %v1131
      %1140 = vst.msk [vmem:[%s280 + $0x88] sm:$0xff] %vm407, %v1132
      %1141 = vst.msk [vmem:[%s280 + $0x90] sm:$0xff] %vm407, %v1133
      %1142 = vst.msk [vmem:[%s280 + $0x98] sm:$0xff] %vm407, %v1134
      %1143 = vst.msk [vmem:[%s280 + $0xa0] sm:$0xff] %vm407, %v1135
      %1144 = vst.msk [vmem:[%s280 + $0xa8] sm:$0xff] %vm407, %v1136
      %1145 = vst.msk [vmem:[%s280 + $0xb0] sm:$0xff] %vm407, %v1137
      %1146 = vst.msk [vmem:[%s280 + $0xb8] sm:$0xff] %vm407, %v1138
      %v1147 = vsel %vm407, %v936, 0.0
      %v1148 = vsel %vm407, %v938, 0.0
      %v1149 = vadd.f32 %v1147, %v1148
      %v1150 = vsel %vm407, %v941, 0.0
      %v1151 = vadd.f32 %v1149, %v1150
      %v1152 = vsel %vm407, %v943, 0.0
      %v1153 = vadd.f32 %v1151, %v1152
      %v1154 = vsel %vm407, %v946, 0.0
      %v1155 = vadd.f32 %v1153, %v1154
      %v1156 = vsel %vm407, %v948, 0.0
      %v1157 = vadd.f32 %v1155, %v1156
      %v1158 = vsel %vm407, %v951, 0.0
      %v1159 = vadd.f32 %v1157, %v1158
      %v1160 = vsel %vm407, %v953, 0.0
      %v1161 = vadd.f32 %v1159, %v1160
      %v1162 = vrot.slane %v1161, 4
      %v1163 = vadd.f32 %v1161, %v1162
      %v1164 = vrot.slane %v1163, 2
      %v1165 = vadd.f32 %v1163, %v1164
      %v1166 = vrot.slane %v1165, 1
      %v1167 = vadd.f32 %v1165, %v1166
      %v1168 = vmul.f32 %v1167, 0.015625
      %v1169 = vsel %vm957, %v1168, 0.0
      %v1170 = vsub.f32 %v936, %v1169
      %v1171 = vsub.f32 %v938, %v1169
      %v1172 = vsub.f32 %v941, %v1169
      %v1173 = vsub.f32 %v943, %v1169
      %v1174 = vsub.f32 %v946, %v1169
      %v1175 = vsub.f32 %v948, %v1169
      %v1176 = vsub.f32 %v951, %v1169
      %v1177 = vsub.f32 %v953, %v1169
      %v1178 = vmul.f32 %v1170, 0.1
      %v1179 = vmul.f32 %v1171, 0.1
      %v1180 = vmul.f32 %v1172, 0.1
      %v1181 = vmul.f32 %v1173, 0.1
      %v1182 = vmul.f32 %v1174, 0.1
      %v1183 = vmul.f32 %v1175, 0.1
      %v1184 = vmul.f32 %v1176, 0.1
      %v1185 = vmul.f32 %v1177, 0.1
      %v1186 = vtanh.pop %v1178
      %v1187 = vtanh.pop %v1179
      %v1188 = vtanh.pop %v1180
      %v1189 = vtanh.pop %v1181
      %v1190 = vtanh.pop %v1182
      %v1191 = vtanh.pop %v1183
      %v1192 = vtanh.pop %v1184
      %v1193 = vtanh.pop %v1185
      %v1194 = vmul.f32 %v1186, 5.0
      %v1195 = vmul.f32 %v1187, 5.0
      %v1196 = vmul.f32 %v1188, 5.0
      %v1197 = vmul.f32 %v1189, 5.0
      %v1198 = vmul.f32 %v1190, 5.0
      %v1199 = vmul.f32 %v1191, 5.0
      %v1200 = vmul.f32 %v1192, 5.0
      %v1201 = vmul.f32 %v1193, 5.0
      %1202 = vst.msk [vmem:[%s280 + $0xc0] sm:$0xff] %vm407, %v1194
      %1203 = vst.msk [vmem:[%s280 + $0xc8] sm:$0xff] %vm407, %v1195
      %1204 = vst.msk [vmem:[%s280 + $0xd0] sm:$0xff] %vm407, %v1196
      %1205 = vst.msk [vmem:[%s280 + $0xd8] sm:$0xff] %vm407, %v1197
      %1206 = vst.msk [vmem:[%s280 + $0xe0] sm:$0xff] %vm407, %v1198
      %1207 = vst.msk [vmem:[%s280 + $0xe8] sm:$0xff] %vm407, %v1199
      %1208 = vst.msk [vmem:[%s280 + $0xf0] sm:$0xff] %vm407, %v1200
      %1209 = vst.msk [vmem:[%s280 + $0xf8] sm:$0xff] %vm407, %v1201
      %s1210 = smul.u32 32, %s18
      %p1211 = scmp.lt.s32.totalorder %s1210, 63
      %s1212 = scalar_select %p1211, %s1210, 63
      %s1213 = smul.addr %s1212, 8
      %s1214 = scalar_lea.vmem %s7, %s1213
      // Predicated region
      $region49: #{tpu_custom_call.1} parent=47 // pred_check
        %p1215 = pneg %p188
      $region50: #{tpu_custom_call.1} parent=47 // pred_check_branch
        %1217 = sbr.rel (%p1215) target = $region52
      $region51: #{tpu_custom_call.1} parent=47 // pred_region
        %s1218 = smul.u32 32, %s18
      $region52: #{tpu_custom_call.1} parent=47 // pred_fallthru
        _
    $region48: #{tpu_custom_call.1} parent=5 // pred_fallthru
      _
    %p1219 = scmp.le.s32.totalorder 2, %s13
    // Predicated region
    $region53: #{tpu_custom_call.1} parent=5 // pred_check
      %p1220 = pneg %p1219
    $region54: #{tpu_custom_call.1} parent=5 // pred_check_branch
      %1222 = sbr.rel (%p1220) target = $region56
    $region55: #{tpu_custom_call.1} parent=5 // pred_region
      %s1223 = ssub.s32 %s13, 2
      // Predicated region
      $region57: #{tpu_custom_call.1} parent=55 // pred_check
        %p1224 = pneg %p194
      $region58: #{tpu_custom_call.1} parent=55 // pred_check_branch
        %1226 = sbr.rel (%p1224) target = $region60
      $region59: #{tpu_custom_call.1} parent=55 // pred_region
        %s1227 = smul.u32 32, %s19
        %p1228 = scmp.lt.s32.totalorder %s1227, 63
        %s1229 = scalar_select %p1228, %s1227, 63
        %s1230 = smul.addr %s1229, 8
        %s1231 = scalar_lea.vmem %s7, %s1230
      $region60: #{tpu_custom_call.1} parent=55 // pred_fallthru
        _
    $region56: #{tpu_custom_call.1} parent=5 // pred_fallthru
      _
  $region6: #{tpu_custom_call.1} parent=0 // loop_footer
    %s17 = sadd.s32 1, %s13
  $region7: #{tpu_custom_call.1} parent=0 // loop_footer_branch
    %12 = sbr.rel target = $region3
  $region8: #{tpu_custom_call.1} parent=0 // loop_exit
    _

</llo_original>
